<compile_context>
chip_gen: v7x
topology: tpu7x:2x2x1
jax: 0.10.0
libtpu: 0.0.40
codegen_flags: <defaults>
</compile_context>

<pallas_src>
import functools

import jax
import jax.numpy as jnp
from jax.experimental import pallas as pl
from jax.experimental.pallas import tpu as pltpu

_EPS = 1e-6  # torch.nn.functional.pairwise_distance default eps


def _round_up(x, m):
    return ((x + m - 1) // m) * m


def _triplet_kernel(q_ref, p_ref, n_ref, out_ref, acc_ref, *,
                    margin, inv_b, valid_rows, valid_lanes,
                    mask_lanes, mask_rows):
    i = pl.program_id(0)

    @pl.when(i == 0)
    def _init():
        acc_ref[...] = jnp.zeros_like(acc_ref)

    # Load tiles, compute in f32 (bf16 inputs are upcast here; v5e VPU has no bf16 ALU).
    q = q_ref[...].astype(jnp.float32)
    p = p_ref[...].astype(jnp.float32)
    n = n_ref[...].astype(jnp.float32)

    tile_b, d_pad = q.shape

    # pairwise_distance: ||x1 - x2 + eps||_2 along the last dim -> (tile_b, 1)
    diff_p = q - p + _EPS
    diff_n = q - n + _EPS
    if mask_lanes:
        # Zero out padded feature lanes so they contribute nothing (not even eps^2).
        lane_ids = jax.lax.broadcasted_iota(jnp.int32, (tile_b, d_pad), 1)
        lane_ok = lane_ids < valid_lanes
        diff_p = jnp.where(lane_ok, diff_p, 0.0)
        diff_n = jnp.where(lane_ok, diff_n, 0.0)

    d_pos = jnp.sqrt(jnp.sum(diff_p * diff_p, axis=-1, keepdims=True))
    d_neg = jnp.sqrt(jnp.sum(diff_n * diff_n, axis=-1, keepdims=True))

    losses = jnp.maximum(d_pos - d_neg + margin, 0.0)  # (tile_b, 1)

    if mask_rows:
        # Zero out padded / ragged batch rows (they would otherwise add `margin` each).
        row_ids = i * tile_b + jax.lax.broadcasted_iota(jnp.int32, (tile_b, 1), 0)
        losses = jnp.where(row_ids < valid_rows, losses, 0.0)

    # Accumulate global SUM; divide by the true batch size once at the end.
    acc_ref[...] += jnp.sum(losses, keepdims=True)

    @pl.when(i == pl.num_programs(0) - 1)
    def _finalize():
        out_ref[...] = acc_ref[...] * inv_b


def triplet_loss(query, positive, negative, margin=1.0, tile_b=None):
    """query/positive/negative: (B, D) arrays. Returns scalar f32 loss."""
    assert query.shape == positive.shape == negative.shape
    B, D = query.shape
    itemsize = int(jnp.dtype(query.dtype).itemsize)

    # Lane-pad the feature dim to a multiple of 128 for full vreg occupancy.
    D_pad = _round_up(max(D, 1), 128)

    if tile_b is None:
        # 3 inputs x 2 pipeline buffers x (tile_b, D_pad) must fit comfortably in VMEM
        # on every generation (v7x: 64 MiB physical; v5e: 16 MiB default scoped).
        vmem_budget = 24 * 1024 * 1024
        max_tile_b = max(8, vmem_budget // (3 * 2 * D_pad * itemsize))
        tile_b = int(max(8, min(1024, (max_tile_b // 8) * 8)))
        if _round_up(B, tile_b) // tile_b == 1:
            # Whole (padded) batch fits in one tile: shrink the tile to the batch.
            tile_b = max(8, _round_up(B, 8))
    else:
        tile_b = max(8, _round_up(int(tile_b), 8))

    B_pad = _round_up(B, tile_b)

    def pad(x):
        if (B_pad, D_pad) == (B, D):
            return x
        # Zero-pad all three inputs identically so padded lanes of (q-p)/(q-n) are 0.
        return jnp.pad(x, ((0, B_pad - B), (0, D_pad - D)))

    q, p, n = pad(query), pad(positive), pad(negative)
    grid = (B_pad // tile_b,)

    kernel = functools.partial(
        _triplet_kernel,
        margin=float(margin),
        inv_b=1.0 / float(B),
        valid_rows=B,
        valid_lanes=D,
        mask_lanes=(D_pad != D),
        mask_rows=(B_pad != B),
    )

    cost = pl.CostEstimate(
        flops=8 * B * D,
        transcendentals=2 * B,
        bytes_accessed=3 * B * D * itemsize + 4,
    )

    out = pl.pallas_call(
        kernel,
        out_shape=jax.ShapeDtypeStruct((1, 1), jnp.float32),
        grid=grid,
        in_specs=[
            pl.BlockSpec((tile_b, D_pad), lambda i: (i, 0)),
            pl.BlockSpec((tile_b, D_pad), lambda i: (i, 0)),
            pl.BlockSpec((tile_b, D_pad), lambda i: (i, 0)),
        ],
        out_specs=pl.BlockSpec((1, 1), lambda i: (0, 0)),
        scratch_shapes=[pltpu.VMEM((1, 1), jnp.float32)],
        compiler_params=pltpu.CompilerParams(
            dimension_semantics=("arbitrary",),
            vmem_limit_bytes=48 * 1024 * 1024,
        ),
        cost_estimate=cost,
    )(q, p, n)
    return out[0, 0]


def triplet_loss_ref(query, positive, negative, margin=1.0):
    # Pure-JAX reference mirroring the PyTorch module.
    dp = jnp.sqrt(jnp.sum((query - positive + _EPS) ** 2, axis=-1))
    dn = jnp.sqrt(jnp.sum((query - negative + _EPS) ** 2, axis=-1))
    return jnp.mean(jnp.maximum(dp - dn + margin, 0.0))


if __name__ == "__main__":
    key = jax.random.PRNGKey(0)
    kq, kp, kn = jax.random.split(key, 3)

    # Small demo shape (feature dim deliberately not a multiple of 128).
    B, D = 8, 32
    query = jax.random.normal(kq, (B, D), dtype=jnp.float32)
    positive = jax.random.normal(kp, (B, D), dtype=jnp.float32)
    negative = jax.random.normal(kn, (B, D), dtype=jnp.float32)

    loss = triplet_loss(query, positive, negative, margin=1.0)
    jax.block_until_ready(loss)
    ref = triplet_loss_ref(query, positive, negative, margin=1.0)
    assert jnp.allclose(loss, ref, atol=1e-5, rtol=1e-5), (loss, ref)

    # Ragged multi-tile check: exercises grid accumulation + row/lane masking.
    B2, D2 = 50, 96
    k2q, k2p, k2n = jax.random.split(jax.random.PRNGKey(1), 3)
    q2 = jax.random.normal(k2q, (B2, D2), dtype=jnp.float32)
    p2 = jax.random.normal(k2p, (B2, D2), dtype=jnp.float32)
    n2 = jax.random.normal(k2n, (B2, D2), dtype=jnp.float32)
    loss2 = triplet_loss(q2, p2, n2, margin=1.0, tile_b=16)
    jax.block_until_ready(loss2)
    ref2 = triplet_loss_ref(q2, p2, n2, margin=1.0)
    assert jnp.allclose(loss2, ref2, atol=1e-5, rtol=1e-5), (loss2, ref2)

    print("KERNEL_OK")
</pallas_src>

<mosaic_0001>
module attributes {stable_mosaic.version = 11 : i64} {
  func.func @_triplet_kernel(%arg0: i32, %arg1: memref<8x128xf32, #tpu.memory_space<vmem>>, %arg2: memref<8x128xf32, #tpu.memory_space<vmem>>, %arg3: memref<8x128xf32, #tpu.memory_space<vmem>>, %arg4: memref<1x1xf32, #tpu.memory_space<vmem>>, %arg5: memref<1x1xf32, #tpu.memory_space<vmem>>) attributes {dimension_semantics = [#tpu.dimension_semantics<arbitrary>], iteration_bounds = array<i64: 1>, scalar_prefetch = 0 : i64, scratch_operands = 1 : i64, tpu.core_type = #tpu.core_type<tc>, window_params = [{transform_indices = @transform_0, window_bounds = array<i64: 8, 128>}, {transform_indices = @transform_1, window_bounds = array<i64: 8, 128>}, {transform_indices = @transform_2, window_bounds = array<i64: 8, 128>}, {pipeline_mode = #tpu.pipeline_mode<synchronous>, transform_indices = @transform_3, window_bounds = array<i64: 1, 1>}]} {
    %c0_i32 = arith.constant 0 : i32
    %0 = arith.cmpi eq, %arg0, %c0_i32 : i32
    %1 = arith.extui %0 : i1 to i32
    %c0_i32_0 = arith.constant 0 : i32
    %2 = arith.cmpi ne, %1, %c0_i32_0 : i32
    scf.if %2 {
      %cst_20 = arith.constant 0.000000e+00 : f32
      %43 = vector.broadcast %cst_20 : f32 to vector<1x1xf32>
      %c0_21 = arith.constant 0 : index
      %c0_22 = arith.constant 0 : index
      %44 = vector.load %arg5[%c0_21, %c0_22] : memref<1x1xf32, #tpu.memory_space<vmem>>, vector<1x1xf32>
      tpu.vector_store %arg5[%c0_21, %c0_22], %43 {strides = array<i32>} : memref<1x1xf32, #tpu.memory_space<vmem>>, vector<1x1xf32>,
    } else {
    }
    %c0 = arith.constant 0 : index
    %c0_1 = arith.constant 0 : index
    %3 = vector.load %arg1[%c0, %c0_1] : memref<8x128xf32, #tpu.memory_space<vmem>>, vector<8x128xf32>
    %c0_2 = arith.constant 0 : index
    %c0_3 = arith.constant 0 : index
    %4 = vector.load %arg2[%c0_2, %c0_3] : memref<8x128xf32, #tpu.memory_space<vmem>>, vector<8x128xf32>
    %c0_4 = arith.constant 0 : index
    %c0_5 = arith.constant 0 : index
    %5 = vector.load %arg3[%c0_4, %c0_5] : memref<8x128xf32, #tpu.memory_space<vmem>>, vector<8x128xf32>
    %6 = arith.subf %3, %4 : vector<8x128xf32>
    %cst = arith.constant 9.99999997E-7 : f32
    %7 = vector.broadcast %cst : f32 to vector<8x128xf32>
    %8 = arith.addf %6, %7 : vector<8x128xf32>
    %9 = arith.subf %3, %5 : vector<8x128xf32>
    %cst_6 = arith.constant 9.99999997E-7 : f32
    %10 = vector.broadcast %cst_6 : f32 to vector<8x128xf32>
    %11 = arith.addf %9, %10 : vector<8x128xf32>
    %12 = tpu.iota {dimensions = array<i32: 1>} : vector<8x128xi32>
    %c32_i32 = arith.constant 32 : i32
    %13 = vector.broadcast %c32_i32 : i32 to vector<8x128xi32>
    %14 = arith.cmpi slt, %12, %13 : vector<8x128xi32>
    %cst_7 = arith.constant 0.000000e+00 : f32
    %15 = vector.broadcast %cst_7 : f32 to vector<8x128xf32>
    %16 = arith.select %14, %8, %15 : vector<8x128xi1>, vector<8x128xf32>
    %cst_8 = arith.constant 0.000000e+00 : f32
    %17 = vector.broadcast %cst_8 : f32 to vector<8x128xf32>
    %18 = arith.select %14, %11, %17 : vector<8x128xi1>, vector<8x128xf32>
    %19 = arith.mulf %16, %16 : vector<8x128xf32>
    %cst_9 = arith.constant dense<0.000000e+00> : vector<8xf32>
    %20 = vector.multi_reduction <add>, %19, %cst_9 [1] : vector<8x128xf32> to vector<8xf32>
    %21 = vector.shape_cast %20 : vector<8xf32> to vector<8x1xf32>
    %22 = math.sqrt %21 : vector<8x1xf32>
    %23 = arith.mulf %18, %18 : vector<8x128xf32>
    %cst_10 = arith.constant dense<0.000000e+00> : vector<8xf32>
    %24 = vector.multi_reduction <add>, %23, %cst_10 [1] : vector<8x128xf32> to vector<8xf32>
    %25 = vector.shape_cast %24 : vector<8xf32> to vector<8x1xf32>
    %26 = math.sqrt %25 : vector<8x1xf32>
    %27 = arith.subf %22, %26 : vector<8x1xf32>
    %cst_11 = arith.constant 1.000000e+00 : f32
    %28 = vector.broadcast %cst_11 : f32 to vector<8x1xf32>
    %29 = arith.addf %27, %28 : vector<8x1xf32>
    %cst_12 = arith.constant 0.000000e+00 : f32
    %30 = vector.broadcast %cst_12 : f32 to vector<8x1xf32>
    %31 = arith.maximumf %29, %30 : vector<8x1xf32>
    %c0_13 = arith.constant 0 : index
    %c0_14 = arith.constant 0 : index
    %32 = vector.load %arg5[%c0_13, %c0_14] : memref<1x1xf32, #tpu.memory_space<vmem>>, vector<1x1xf32>
    %33 = vector.shape_cast %31 : vector<8x1xf32> to vector<1x8x1xf32>
    %cst_15 = arith.constant dense<0.000000e+00> : vector<1xf32>
    %34 = vector.multi_reduction <add>, %33, %cst_15 [1, 2] : vector<1x8x1xf32> to vector<1xf32>
    %35 = vector.shape_cast %34 : vector<1xf32> to vector<1x1x1xf32>
    %36 = vector.extract %35[0, 0, 0] : f32 from vector<1x1x1xf32>
    %37 = vector.broadcast %36 : f32 to vector<1x1xf32>
    %38 = arith.addf %32, %37 : vector<1x1xf32>
    %c0_16 = arith.constant 0 : index
    %c0_17 = arith.constant 0 : index
    %39 = vector.load %arg5[%c0_16, %c0_17] : memref<1x1xf32, #tpu.memory_space<vmem>>, vector<1x1xf32>
    tpu.vector_store %arg5[%c0_16, %c0_17], %38 {strides = array<i32>} : memref<1x1xf32, #tpu.memory_space<vmem>>, vector<1x1xf32>,
    %c0_i32_18 = arith.constant 0 : i32
    %40 = arith.cmpi eq, %arg0, %c0_i32_18 : i32
    %41 = arith.extui %40 : i1 to i32
    %c0_i32_19 = arith.constant 0 : i32
    %42 = arith.cmpi ne, %41, %c0_i32_19 : i32
    scf.if %42 {
      %c0_20 = arith.constant 0 : index
      %c0_21 = arith.constant 0 : index
      %43 = vector.load %arg5[%c0_20, %c0_21] : memref<1x1xf32, #tpu.memory_space<vmem>>, vector<1x1xf32>
      %cst_22 = arith.constant 1.250000e-01 : f32
      %44 = vector.broadcast %cst_22 : f32 to vector<1x1xf32>
      %45 = arith.mulf %43, %44 : vector<1x1xf32>
      %c0_23 = arith.constant 0 : index
      %c0_24 = arith.constant 0 : index
      %46 = vector.load %arg4[%c0_23, %c0_24] : memref<1x1xf32, #tpu.memory_space<vmem>>, vector<1x1xf32>
      tpu.vector_store %arg4[%c0_23, %c0_24], %45 {strides = array<i32>} : memref<1x1xf32, #tpu.memory_space<vmem>>, vector<1x1xf32>,
    } else {
    }
    return
  }
  func.func @transform_0(%arg0: i32) -> (i32, i32) {
    %c0_i32 = arith.constant 0 : i32
    %c0_i32_0 = arith.constant 0 : i32
    return %arg0, %c0_i32 : i32, i32
  }
  func.func @transform_1(%arg0: i32) -> (i32, i32) {
    %c0_i32 = arith.constant 0 : i32
    %c0_i32_0 = arith.constant 0 : i32
    return %arg0, %c0_i32 : i32, i32
  }
  func.func @transform_2(%arg0: i32) -> (i32, i32) {
    %c0_i32 = arith.constant 0 : i32
    %c0_i32_0 = arith.constant 0 : i32
    return %arg0, %c0_i32 : i32, i32
  }
  func.func @transform_3(%arg0: i32) -> (i32, i32) {
    %c0_i32 = arith.constant 0 : i32
    %c0_i32_0 = arith.constant 0 : i32
    %c0_i32_1 = arith.constant 0 : i32
    return %c0_i32, %c0_i32_0 : i32, i32
  }
}

</mosaic_0001>

<llo_original>
// kernel: tpu_custom_call.1
$region0: #{tpu_custom_call.1}
  #allocation0 [shape = 'u32[]', space=smem, size = 0x4, offset = 0x4, fixed_abs, tag = 'smem constant byte address 0x4 - core index']
  #allocation1 [shape = 'u32[144,128]{1,0:T(1,128)}', space=vmem, size = 0x12000, scoped, tag = 'internal scratch']
  #allocation2 [shape = 'f32[1,1]{1,0:T(1,128)}', space=vmem, size = 0x200, scoped, tag = 'scratch operand']
  %s0 = inlined_call_operand.hbm [shape: f32[8,128], index: 0, kind: input, shape index: {}]
  %s1 = inlined_call_operand.hbm [shape: f32[8,128], index: 1, kind: input, shape index: {}]
  %s2 = inlined_call_operand.hbm [shape: f32[8,128], index: 2, kind: input, shape index: {}]
  %s3 = inlined_call_operand.hbm [shape: f32[1,1], index: 3, kind: output, shape index: {}]
  %s4 = sld [smem:[#allocation0]]
  $region42: #{tpu_custom_call.1} parent=0
    _
  %s6 = ssub.s32 1, %s4
  %s7 = scalar_select 0, %s6, %s4
  $region1: #{tpu_custom_call.1} parent=0
    #allocation3 [shape = 'u8[4096]{0}', space=vmem, size = 0x1000, scoped, tag = 'input window, operand 0, single buffered']
    #allocation4 [shape = 's32[1]{0}', space=sflag, size = 0x4, scoped, tag = 'scoped memory for tpu_custom_call.1']
    #allocation5 [shape = 's32[1]{0}', space=sflag, size = 0x4, scoped, tag = 'scoped memory for tpu_custom_call.1']
    #allocation6 [shape = 'u8[4096]{0}', space=vmem, size = 0x1000, scoped, tag = 'input window, operand 1, single buffered']
    #allocation7 [shape = 's32[1]{0}', space=sflag, size = 0x4, scoped, tag = 'scoped memory for tpu_custom_call.1']
    #allocation8 [shape = 'u8[4096]{0}', space=vmem, size = 0x1000, scoped, tag = 'input window, operand 2, single buffered']
    #allocation9 [shape = 'u8[512]{0}', space=vmem, size = 0x400, scoped, tag = 'output window, operand 0, single buffered']
    %8 = vsyncpa [#allocation4], 0
    %9 = vsyncpa [#allocation7], 0
    %10 = vsyncpa [#allocation5], 0
    // Predicated region
    $region2: #{tpu_custom_call.1} parent=1 // pred_check
      _
    $region3: #{tpu_custom_call.1} parent=1 // pred_check_branch
      %12 = sbr.rel (0) target = $region5
    $region4: #{tpu_custom_call.1} parent=1 // pred_region
      %s14 = ssub.s32 128, 128
      %15 = vsyncadd [#allocation4], %s14
      %s17 = sshll.u32 [#allocation3], 4
      %s18 = int_to_ptr.vmem [resolvable:$true] %s17
      %20 = dma.hbm_to_vmem [thread:$0]  %s0, 128, %s18, [#allocation4]
    $region5: #{tpu_custom_call.1} parent=1 // pred_fallthru
      _
    // Predicated region
    $region6: #{tpu_custom_call.1} parent=1 // pred_check
      _
    $region7: #{tpu_custom_call.1} parent=1 // pred_check_branch
      %22 = sbr.rel (0) target = $region9
    $region8: #{tpu_custom_call.1} parent=1 // pred_region
      %s24 = ssub.s32 128, 128
      %25 = vsyncadd [#allocation7], %s24
      %s27 = sshll.u32 [#allocation6], 4
      %s28 = int_to_ptr.vmem [resolvable:$true] %s27
      %30 = dma.hbm_to_vmem [thread:$0]  %s1, 128, %s28, [#allocation7]
    $region9: #{tpu_custom_call.1} parent=1 // pred_fallthru
      _
    // Predicated region
    $region10: #{tpu_custom_call.1} parent=1 // pred_check
      _
    $region11: #{tpu_custom_call.1} parent=1 // pred_check_branch
      %32 = sbr.rel (0) target = $region13
    $region12: #{tpu_custom_call.1} parent=1 // pred_region
      %s34 = ssub.s32 128, 128
      %35 = vsyncadd [#allocation7], %s34
      %s37 = sshll.u32 [#allocation8], 4
      %s38 = int_to_ptr.vmem [resolvable:$true] %s37
      %40 = dma.hbm_to_vmem [thread:$0]  %s2, 128, %s38, [#allocation7]
    $region13: #{tpu_custom_call.1} parent=1 // pred_fallthru
      _
    // Predicated region
    $region14: #{tpu_custom_call.1} parent=1 // pred_check
      _
    $region15: #{tpu_custom_call.1} parent=1 // pred_check_branch
      %42 = sbr.rel (0) target = $region17
    $region16: #{tpu_custom_call.1} parent=1 // pred_region
      %43 = dma.done [#allocation4], 128
    $region17: #{tpu_custom_call.1} parent=1 // pred_fallthru
      _
    // Predicated region
    $region18: #{tpu_custom_call.1} parent=1 // pred_check
      _
    $region19: #{tpu_custom_call.1} parent=1 // pred_check_branch
      %45 = sbr.rel (0) target = $region21
    $region20: #{tpu_custom_call.1} parent=1 // pred_region
      %46 = dma.done [#allocation7], 128
    $region21: #{tpu_custom_call.1} parent=1 // pred_fallthru
      _
    // Predicated region
    $region22: #{tpu_custom_call.1} parent=1 // pred_check
      _
    $region23: #{tpu_custom_call.1} parent=1 // pred_check_branch
      %48 = sbr.rel (0) target = $region25
    $region24: #{tpu_custom_call.1} parent=1 // pred_region
      %49 = dma.done [#allocation7], 128
    $region25: #{tpu_custom_call.1} parent=1 // pred_fallthru
      _
    %p50 = scmp.eq.s32.totalorder 0, 0
    // Predicated region
    $region26: #{tpu_custom_call.1} parent=1 // pred_check
      %p51 = pneg %p50
    $region27: #{tpu_custom_call.1} parent=1 // pred_check_branch
      %53 = sbr.rel (%p51) target = $region29
    $region28: #{tpu_custom_call.1} parent=1 // pred_region
      %vm54 = vcmask 0
      %55 = vst.msk [vmem:[#allocation2] sm:$0x1] %vm54, 0.0
    $region29: #{tpu_custom_call.1} parent=1 // pred_fallthru
      _
    %v56 = vld [vmem:[#allocation3] sm:$0xff]
    %v57 = vld [vmem:[#allocation6] sm:$0xff]
    %v58 = vld [vmem:[#allocation8] sm:$0xff]
    %v59 = vsub.f32 %v56, %v57
    %v60 = vadd.f32 %v59, 1e-06
    %v61 = vsub.f32 %v56, %v58
    %v62 = vadd.f32 %v61, 1e-06
    %v63 = vlaneseq
    %v64 = vand.u32 %v63, 127
    %vm65 = vcmp.lt.s32.totalorder %v64, 32
    %v66 = vsel %vm65, %v60, 0.0
    %v67 = vsel %vm65, %v62, 0.0
    %v68 = vmul.f32 %v66, %v66
    %69 = vadd.xlane.f32.xlu0 %v68
    %v70 = vpop.xlane.xlu0 %69
    %v71 = vrsqrt.pop %v70
    %v72 = vmul.f32 %v70, %v71
    %vm73 = vcmp.eq.f32.partialorder %v70, inf
    %v74 = vsel %vm73, %v70, %v72
    %vm75 = vcmp.eq.f32.partialorder %v70, 0.0
    %v76 = vand.u32 %v70, 2147483648
    %v77 = vsel %vm75, %v76, %v74
    %v78 = vmul.f32 %v67, %v67
    %79 = vadd.xlane.f32.xlu0 %v78
    %v80 = vpop.xlane.xlu0 %79
    %v81 = vrsqrt.pop %v80
    %v82 = vmul.f32 %v80, %v81
    %vm83 = vcmp.eq.f32.partialorder %v80, inf
    %v84 = vsel %vm83, %v80, %v82
    %vm85 = vcmp.eq.f32.partialorder %v80, 0.0
    %v86 = vand.u32 %v80, 2147483648
    %v87 = vsel %vm85, %v86, %v84
    %v88 = vsub.f32 %v77, %v87
    %v89 = vadd.f32 %v88, 1.0
    %v90 = vmax.f32 %v89, 0.0
    %v91 = vld [vmem:[#allocation2] sm:$0x1]
    %vm92 = vcmask 7168
    %v93 = vsel %vm92, %v90, 0.0
    %94 = vadd.xlane.f32.xlu0 %v93
    %v95 = vpop.xlane.xlu0 %94
    %v96 = vrot.slane %v95, 4
    %v97 = vadd.f32 %v95, %v96
    %v98 = vrot.slane %v97, 2
    %v99 = vadd.f32 %v97, %v98
    %v100 = vrot.slane %v99, 1
    %v101 = vadd.f32 %v99, %v100
    %s102 = vtos %v101
    %v103 = vstv %s102
    %v104 = vadd.f32 %v91, %v103
    %vm105 = vcmask 0
    %106 = vst.msk [vmem:[#allocation2] sm:$0x1] %vm105, %v104
    // Predicated region
    $region30: #{tpu_custom_call.1} parent=1 // pred_check
      %p107 = pneg %p50
    $region31: #{tpu_custom_call.1} parent=1 // pred_check_branch
      %109 = sbr.rel (%p107) target = $region33
    $region32: #{tpu_custom_call.1} parent=1 // pred_region
      %v110 = vld [vmem:[#allocation2] sm:$0x1]
      %v111 = vmul.f32 %v110, 0.125
      %112 = vst.msk [vmem:[#allocation9] sm:$0x1] %vm105, %v111
    $region33: #{tpu_custom_call.1} parent=1 // pred_fallthru
      _
    // Predicated region
    $region34: #{tpu_custom_call.1} parent=1 // pred_check
      _
    $region35: #{tpu_custom_call.1} parent=1 // pred_check_branch
      %114 = sbr.rel (0) target = $region37
    $region36: #{tpu_custom_call.1} parent=1 // pred_region
      %s116 = ssub.s32 16, 16
      %117 = vsyncadd [#allocation5], %s116
      %s119 = sshll.u32 [#allocation9], 4
      %s120 = int_to_ptr.vmem [resolvable:$true] %s119
      %122 = dma.vmem_to_hbm [thread:$0]  %s120, 16, %s3, [#allocation5]
    $region37: #{tpu_custom_call.1} parent=1 // pred_fallthru
      _
    // Predicated region
    $region38: #{tpu_custom_call.1} parent=1 // pred_check
      _
    $region39: #{tpu_custom_call.1} parent=1 // pred_check_branch
      %124 = sbr.rel (0) target = $region41
    $region40: #{tpu_custom_call.1} parent=1 // pred_region
      %125 = dma.done [#allocation5], 16
    $region41: #{tpu_custom_call.1} parent=1 // pred_fallthru
      _
    %126 = vsyncpa [#allocation4], 1
    %127 = vsyncpa [#allocation7], 1
    %128 = vsyncpa [#allocation5], 1

</llo_original>
